<compile_context>
chip_gen: v5e
topology: v5e:2x2
jax: 0.10.0
libtpu: 0.0.40
codegen_flags: <defaults>
</compile_context>

<pallas_src>
import functools
import operator

import jax
import jax.numpy as jnp
from jax.experimental import pallas as pl
from jax.experimental.pallas import tpu as pltpu

# Module hyper-parameters (deterministic, from __init__ defaults).
SCALE_LIMIT = 0.05
SHEAR_LIMIT = 0.1
ROTATION_LIMIT = 0.1     # unused when rotate_value is None (ReLU branch taken)
TRANS_LIMIT = 0.15
ADJ_MASK_PARA = 0.0
EMBEDDING_SIZE = 6       # column used for the mask-intensity parameter

# Packed output lane layout (one f32 row per batch element):
#   lanes  0..5  : scaler_shear flat  [scale_1, shear_2, 0, shear_1, scale_2, 0]
#   lanes  6..11 : rotation     flat  [cos, -sin, 0, sin, cos, 0]
#   lanes 12..17 : translation  flat  [1, 0, trans_1, 0, 1, trans_2]
#   lane  18     : mask parameter
PACK_W = 19


def _affine_kernel(x_ref, o_ref):
    """x_ref: [tb, C] (native dtype, C = min(E, 128)); o_ref: [tb, PACK_W] f32."""
    # Only the first 6 lanes feed the transcendentals (EUP) — never full width.
    x = x_ref[:, 0:6].astype(jnp.float32)
    t = jnp.tanh(x)

    scale_1 = SCALE_LIMIT * t[:, 0:1] + 1.0          # [tb, 1]
    scale_2 = SCALE_LIMIT * t[:, 1:2] + 1.0
    rotate = jnp.maximum(x[:, 2:3], 0.0)             # rotate_value=None -> ReLU
    shear = SHEAR_LIMIT * t[:, 3:4]                  # Symmetric -> shear_1 == shear_2
    trans_1 = TRANS_LIMIT * t[:, 4:5]
    trans_2 = TRANS_LIMIT * t[:, 5:6]
    cos_r = jnp.cos(rotate)
    sin_r = jnp.sin(rotate)

    tb = o_ref.shape[0]
    col = jax.lax.broadcasted_iota(jnp.int32, (tb, PACK_W), 1)

    def lanes_eq(lanes):
        return functools.reduce(operator.or_, [col == l for l in lanes])

    # Constant lanes first (translation identity diagonal; mask when adj == 0).
    if ADJ_MASK_PARA == 0.0:
        packed = lanes_eq((12, 16, 18)).astype(jnp.float32)
    else:
        packed = lanes_eq((12, 16)).astype(jnp.float32)
        mask = ADJ_MASK_PARA * jnp.tanh(
            x_ref[:, EMBEDDING_SIZE:EMBEDDING_SIZE + 1].astype(jnp.float32)) + 1.0
        packed = jnp.where(col == 18, mask, packed)

    # Non-constant lanes: 8 lane-selects on a single narrow [tb, 19] tile.
    packed = jnp.where(col == 0, scale_1, packed)
    packed = jnp.where(lanes_eq((1, 3)), shear, packed)
    packed = jnp.where(col == 4, scale_2, packed)
    packed = jnp.where(lanes_eq((6, 10)), cos_r, packed)
    packed = jnp.where(col == 7, -sin_r, packed)
    packed = jnp.where(col == 9, sin_r, packed)
    packed = jnp.where(col == 14, trans_1, packed)
    packed = jnp.where(col == 17, trans_2, packed)

    # Single full-tile store (no per-column masked stores).
    o_ref[...] = packed


def affine_transform(out, *, tile_b=1024):
    """Returns (scaler_shear [B,2,3], rotation [B,2,3], translation [B,2,3], mask [B,1])."""
    B, E = out.shape
    assert E >= 6, "Affine_Transform consumes at least 6 embedding columns"

    # Only DMA the lanes we actually use (first 128 when E is wide).
    C = E if E <= 128 else 128

    # Batch tile: full B for small batches, otherwise a multiple-of-8 tile.
    tb = B if B <= tile_b else tile_b
    if tb != B and tb % 8 != 0:
        tb = max(8, (tb // 8) * 8)
    grid = (pl.cdiv(B, tb),)

    packed = pl.pallas_call(
        _affine_kernel,
        out_shape=jax.ShapeDtypeStruct((B, PACK_W), jnp.float32),
        grid=grid,
        in_specs=[pl.BlockSpec((tb, C), lambda i: (i, 0))],
        out_specs=pl.BlockSpec((tb, PACK_W), lambda i: (i, 0)),
        compiler_params=pltpu.CompilerParams(
            dimension_semantics=("parallel",)),
    )(out)

    scaler_shear = packed[:, 0:6].reshape(B, 2, 3)
    rotation = packed[:, 6:12].reshape(B, 2, 3)
    translation = packed[:, 12:18].reshape(B, 2, 3)
    mask = packed[:, 18:19]
    return scaler_shear, rotation, translation, mask


def _reference(out):
    """Plain-JAX reference mirroring the PyTorch forward (default flags)."""
    out = out.astype(jnp.float32)
    B = out.shape[0]
    scale_1 = SCALE_LIMIT * jnp.tanh(out[:, 0]) + 1.0
    scale_2 = SCALE_LIMIT * jnp.tanh(out[:, 1]) + 1.0
    rotate = jax.nn.relu(out[:, 2])
    shear_1 = SHEAR_LIMIT * jnp.tanh(out[:, 3])
    shear_2 = shear_1
    trans_1 = TRANS_LIMIT * jnp.tanh(out[:, 4])
    trans_2 = TRANS_LIMIT * jnp.tanh(out[:, 5])
    mask = ADJ_MASK_PARA * jnp.tanh(out[:, EMBEDDING_SIZE:EMBEDDING_SIZE + 1]) + 1.0
    a1, a2 = jnp.cos(rotate), jnp.sin(rotate)
    a4, a5 = jnp.ones((B,)), jnp.zeros((B,))
    ss = jnp.stack(
        [jnp.stack((scale_1, shear_1), 1),
         jnp.stack((shear_2, scale_2), 1),
         jnp.stack((a5, a5), 1)], axis=2)
    rot = jnp.stack(
        [jnp.stack((a1, a2), 1),
         jnp.stack((-a2, a1), 1),
         jnp.stack((a5, a5), 1)], axis=2)
    tr = jnp.stack(
        [jnp.stack((a4, a5), 1),
         jnp.stack((a5, a4), 1),
         jnp.stack((trans_1, trans_2), 1)], axis=2)
    return ss, rot, tr, mask


if __name__ == "__main__":
    key = jax.random.PRNGKey(0)

    # Small shape matching the module's latent output: batch=2, embedding=8.
    B, E = 2, 8
    out_small = jax.random.normal(key, (B, E), dtype=jnp.float32)
    results = jax.block_until_ready(affine_transform(out_small))
    refs = _reference(out_small)
    for got, exp in zip(results, refs):
        assert got.shape == exp.shape, (got.shape, exp.shape)
        assert jnp.allclose(got, exp, atol=1e-3), (got, exp)

    # Larger batch to exercise the tiled (multi-step, lane-sliced) grid path.
    B2, E2 = 1024, 256
    out_large = jax.random.normal(jax.random.PRNGKey(1), (B2, E2), dtype=jnp.float32)
    results2 = jax.block_until_ready(affine_transform(out_large, tile_b=256))
    refs2 = _reference(out_large)
    for got, exp in zip(results2, refs2):
        assert got.shape == exp.shape, (got.shape, exp.shape)
        assert jnp.allclose(got, exp, atol=1e-3), (got, exp)

    print("KERNEL_OK")
</pallas_src>

<mosaic_0001>
module attributes {stable_mosaic.version = 11 : i64} {
  func.func @_affine_kernel(%arg0: i32, %arg1: memref<2x8xf32, #tpu.memory_space<vmem>>, %arg2: memref<2x19xf32, #tpu.memory_space<vmem>>) attributes {dimension_semantics = [#tpu.dimension_semantics<parallel>], iteration_bounds = array<i64: 1>, scalar_prefetch = 0 : i64, scratch_operands = 0 : i64, tpu.core_type = #tpu.core_type<tc>, window_params = [{transform_indices = @transform_0, window_bounds = array<i64: 2, 8>}, {transform_indices = @transform_1, window_bounds = array<i64: 2, 19>}]} {
    %c0 = arith.constant 0 : index
    %c0_0 = arith.constant 0 : index
    %0 = vector.load %arg1[%c0, %c0_0] : memref<2x8xf32, #tpu.memory_space<vmem>>, vector<2x6xf32>
    %1 = math.tanh %0 : vector<2x6xf32>
    %2 = vector.extract_strided_slice %1 {offsets = [0, 0], sizes = [2, 1], strides = [1, 1]} : vector<2x6xf32> to vector<2x1xf32>
    %cst = arith.constant 5.000000e-02 : f32
    %3 = vector.broadcast %cst : f32 to vector<2x1xf32>
    %4 = arith.mulf %3, %2 : vector<2x1xf32>
    %cst_1 = arith.constant 1.000000e+00 : f32
    %5 = vector.broadcast %cst_1 : f32 to vector<2x1xf32>
    %6 = arith.addf %4, %5 : vector<2x1xf32>
    %7 = vector.extract_strided_slice %1 {offsets = [0, 1], sizes = [2, 1], strides = [1, 1]} : vector<2x6xf32> to vector<2x1xf32>
    %cst_2 = arith.constant 5.000000e-02 : f32
    %8 = vector.broadcast %cst_2 : f32 to vector<2x1xf32>
    %9 = arith.mulf %8, %7 : vector<2x1xf32>
    %cst_3 = arith.constant 1.000000e+00 : f32
    %10 = vector.broadcast %cst_3 : f32 to vector<2x1xf32>
    %11 = arith.addf %9, %10 : vector<2x1xf32>
    %12 = vector.extract_strided_slice %0 {offsets = [0, 2], sizes = [2, 1], strides = [1, 1]} : vector<2x6xf32> to vector<2x1xf32>
    %cst_4 = arith.constant 0.000000e+00 : f32
    %13 = vector.broadcast %cst_4 : f32 to vector<2x1xf32>
    %14 = arith.maximumf %12, %13 : vector<2x1xf32>
    %15 = vector.extract_strided_slice %1 {offsets = [0, 3], sizes = [2, 1], strides = [1, 1]} : vector<2x6xf32> to vector<2x1xf32>
    %cst_5 = arith.constant 1.000000e-01 : f32
    %16 = vector.broadcast %cst_5 : f32 to vector<2x1xf32>
    %17 = arith.mulf %16, %15 : vector<2x1xf32>
    %18 = vector.extract_strided_slice %1 {offsets = [0, 4], sizes = [2, 1], strides = [1, 1]} : vector<2x6xf32> to vector<2x1xf32>
    %cst_6 = arith.constant 1.500000e-01 : f32
    %19 = vector.broadcast %cst_6 : f32 to vector<2x1xf32>
    %20 = arith.mulf %19, %18 : vector<2x1xf32>
    %21 = vector.extract_strided_slice %1 {offsets = [0, 5], sizes = [2, 1], strides = [1, 1]} : vector<2x6xf32> to vector<2x1xf32>
    %cst_7 = arith.constant 1.500000e-01 : f32
    %22 = vector.broadcast %cst_7 : f32 to vector<2x1xf32>
    %23 = arith.mulf %22, %21 : vector<2x1xf32>
    %24 = math.cos %14 : vector<2x1xf32>
    %25 = math.sin %14 : vector<2x1xf32>
    %26 = tpu.iota {dimensions = array<i32: 1>} : vector<2x19xi32>
    %c12_i32 = arith.constant 12 : i32
    %27 = vector.broadcast %c12_i32 : i32 to vector<2x19xi32>
    %28 = arith.cmpi eq, %26, %27 : vector<2x19xi32>
    %c16_i32 = arith.constant 16 : i32
    %29 = vector.broadcast %c16_i32 : i32 to vector<2x19xi32>
    %30 = arith.cmpi eq, %26, %29 : vector<2x19xi32>
    %c18_i32 = arith.constant 18 : i32
    %31 = vector.broadcast %c18_i32 : i32 to vector<2x19xi32>
    %32 = arith.cmpi eq, %26, %31 : vector<2x19xi32>
    %33 = arith.ori %28, %30 : vector<2x19xi1>
    %34 = arith.ori %33, %32 : vector<2x19xi1>
    %35 = arith.extui %34 : vector<2x19xi1> to vector<2x19xi32>
    %36 = arith.sitofp %35 : vector<2x19xi32> to vector<2x19xf32>
    %c0_i32 = arith.constant 0 : i32
    %37 = vector.broadcast %c0_i32 : i32 to vector<2x19xi32>
    %38 = arith.cmpi eq, %26, %37 : vector<2x19xi32>
    %39 = vector.shape_cast %6 : vector<2x1xf32> to vector<2x1xf32>
    %40 = vector.broadcast %39 : vector<2x1xf32> to vector<2x19xf32>
    %41 = arith.select %38, %40, %36 : vector<2x19xi1>, vector<2x19xf32>
    %c1_i32 = arith.constant 1 : i32
    %42 = vector.broadcast %c1_i32 : i32 to vector<2x19xi32>
    %43 = arith.cmpi eq, %26, %42 : vector<2x19xi32>
    %c3_i32 = arith.constant 3 : i32
    %44 = vector.broadcast %c3_i32 : i32 to vector<2x19xi32>
    %45 = arith.cmpi eq, %26, %44 : vector<2x19xi32>
    %46 = arith.ori %43, %45 : vector<2x19xi1>
    %47 = vector.shape_cast %17 : vector<2x1xf32> to vector<2x1xf32>
    %48 = vector.broadcast %47 : vector<2x1xf32> to vector<2x19xf32>
    %49 = arith.select %46, %48, %41 : vector<2x19xi1>, vector<2x19xf32>
    %c4_i32 = arith.constant 4 : i32
    %50 = vector.broadcast %c4_i32 : i32 to vector<2x19xi32>
    %51 = arith.cmpi eq, %26, %50 : vector<2x19xi32>
    %52 = vector.shape_cast %11 : vector<2x1xf32> to vector<2x1xf32>
    %53 = vector.broadcast %52 : vector<2x1xf32> to vector<2x19xf32>
    %54 = arith.select %51, %53, %49 : vector<2x19xi1>, vector<2x19xf32>
    %c6_i32 = arith.constant 6 : i32
    %55 = vector.broadcast %c6_i32 : i32 to vector<2x19xi32>
    %56 = arith.cmpi eq, %26, %55 : vector<2x19xi32>
    %c10_i32 = arith.constant 10 : i32
    %57 = vector.broadcast %c10_i32 : i32 to vector<2x19xi32>
    %58 = arith.cmpi eq, %26, %57 : vector<2x19xi32>
    %59 = arith.ori %56, %58 : vector<2x19xi1>
    %60 = vector.shape_cast %24 : vector<2x1xf32> to vector<2x1xf32>
    %61 = vector.broadcast %60 : vector<2x1xf32> to vector<2x19xf32>
    %62 = arith.select %59, %61, %54 : vector<2x19xi1>, vector<2x19xf32>
    %c7_i32 = arith.constant 7 : i32
    %63 = vector.broadcast %c7_i32 : i32 to vector<2x19xi32>
    %64 = arith.cmpi eq, %26, %63 : vector<2x19xi32>
    %cst_8 = arith.constant 0.000000e+00 : f32
    %65 = vector.broadcast %cst_8 : f32 to vector<2x1xf32>
    %66 = arith.subf %65, %25 : vector<2x1xf32>
    %67 = vector.shape_cast %66 : vector<2x1xf32> to vector<2x1xf32>
    %68 = vector.broadcast %67 : vector<2x1xf32> to vector<2x19xf32>
    %69 = arith.select %64, %68, %62 : vector<2x19xi1>, vector<2x19xf32>
    %c9_i32 = arith.constant 9 : i32
    %70 = vector.broadcast %c9_i32 : i32 to vector<2x19xi32>
    %71 = arith.cmpi eq, %26, %70 : vector<2x19xi32>
    %72 = vector.shape_cast %25 : vector<2x1xf32> to vector<2x1xf32>
    %73 = vector.broadcast %72 : vector<2x1xf32> to vector<2x19xf32>
    %74 = arith.select %71, %73, %69 : vector<2x19xi1>, vector<2x19xf32>
    %c14_i32 = arith.constant 14 : i32
    %75 = vector.broadcast %c14_i32 : i32 to vector<2x19xi32>
    %76 = arith.cmpi eq, %26, %75 : vector<2x19xi32>
    %77 = vector.shape_cast %20 : vector<2x1xf32> to vector<2x1xf32>
    %78 = vector.broadcast %77 : vector<2x1xf32> to vector<2x19xf32>
    %79 = arith.select %76, %78, %74 : vector<2x19xi1>, vector<2x19xf32>
    %c17_i32 = arith.constant 17 : i32
    %80 = vector.broadcast %c17_i32 : i32 to vector<2x19xi32>
    %81 = arith.cmpi eq, %26, %80 : vector<2x19xi32>
    %82 = vector.shape_cast %23 : vector<2x1xf32> to vector<2x1xf32>
    %83 = vector.broadcast %82 : vector<2x1xf32> to vector<2x19xf32>
    %84 = arith.select %81, %83, %79 : vector<2x19xi1>, vector<2x19xf32>
    %c0_9 = arith.constant 0 : index
    %c0_10 = arith.constant 0 : index
    %85 = vector.load %arg2[%c0_9, %c0_10] : memref<2x19xf32, #tpu.memory_space<vmem>>, vector<2x19xf32>
    tpu.vector_store %arg2[%c0_9, %c0_10], %84 {strides = array<i32>} : memref<2x19xf32, #tpu.memory_space<vmem>>, vector<2x19xf32>,
    return
  }
  func.func @transform_0(%arg0: i32) -> (i32, i32) {
    %c0_i32 = arith.constant 0 : i32
    %c0_i32_0 = arith.constant 0 : i32
    return %arg0, %c0_i32 : i32, i32
  }
  func.func @transform_1(%arg0: i32) -> (i32, i32) {
    %c0_i32 = arith.constant 0 : i32
    %c0_i32_0 = arith.constant 0 : i32
    return %arg0, %c0_i32 : i32, i32
  }
}

</mosaic_0001>

<llo_original>
// kernel: tpu_custom_call.1
$region0: #{tpu_custom_call.1}
  #allocation0 [shape = 'u32[]', space=smem, size = 0x4, offset = 0x4, fixed_abs, tag = 'smem constant byte address 0x4 - core index']
  #allocation1 [shape = 'u32[72,128]{1,0:T(1,128)}', space=vmem, size = 0x9000, scoped, tag = 'internal scratch']
  %s0 = inlined_call_operand.hbm [shape: f32[2,8], index: 0, kind: input, shape index: {}]
  %s1 = inlined_call_operand.hbm [shape: f32[2,19], index: 1, kind: output, shape index: {}]
  %s2 = sld [smem:[#allocation0]]
  $region18: #{tpu_custom_call.1} parent=0
    _
  %s4 = ssub.s32 1, %s2
  %s5 = scalar_select 0, %s4, %s2
  $region1: #{tpu_custom_call.1} parent=0
    #allocation2 [shape = 'u8[1024]{0}', space=vmem, size = 0x400, scoped, tag = 'input window, operand 0, single buffered']
    #allocation3 [shape = 's32[1]{0}', space=sflag, size = 0x4, scoped, tag = 'scoped memory for tpu_custom_call.1']
    #allocation4 [shape = 's32[1]{0}', space=sflag, size = 0x4, scoped, tag = 'scoped memory for tpu_custom_call.1']
    #allocation5 [shape = 'u8[1024]{0}', space=vmem, size = 0x400, scoped, tag = 'output window, operand 0, single buffered']
    %6 = vsyncpa [#allocation3], 0
    %7 = vsyncpa [#allocation4], 0
    // Predicated region
    $region2: #{tpu_custom_call.1} parent=1 // pred_check
      _
    $region3: #{tpu_custom_call.1} parent=1 // pred_check_branch
      %9 = sbr.rel (0) target = $region5
    $region4: #{tpu_custom_call.1} parent=1 // pred_region
      %11 = vsyncadd [#allocation3], 0
      %s13 = sshll.u32 %s0, 4
      %s14 = int_to_ptr.hbm [resolvable:$true] %s13
      %s15 = sshll.u32 [#allocation2], 4
      %s16 = int_to_ptr.vmem [resolvable:$true] %s15
      %18 = dma.hbm_to_vmem [thread:$0]  %s14, 32, %s16, [#allocation3]
    $region5: #{tpu_custom_call.1} parent=1 // pred_fallthru
      _
    // Predicated region
    $region6: #{tpu_custom_call.1} parent=1 // pred_check
      _
    $region7: #{tpu_custom_call.1} parent=1 // pred_check_branch
      %20 = sbr.rel (0) target = $region9
    $region8: #{tpu_custom_call.1} parent=1 // pred_region
      %22 = dma.done [#allocation3], 32
    $region9: #{tpu_custom_call.1} parent=1 // pred_fallthru
      _
    %v23 = vld [vmem:[#allocation2] sm:$0x3]
    %v24 = vtanh.pop %v23
    %v25 = vmul.f32 %v24, 0.05
    %v26 = vadd.f32 %v25, 1.0
    %v27 = vmax.f32 %v23, 0.0
    %v28 = vmul.f32 %v24, 0.1
    %v29 = vmul.f32 %v24, 0.15
    %v30 = vand.u32 2147483647, %v27
    %vm31 = vcmp.le.f32.partialorder %v30, 0.7853982
    %vm32 = vcmp.lt.s32.totalorder %v27, 0
    %v33 = vand.u32 %v27, 2139095040
    %v34 = vshrl.u32 %v33, 23
    %v35 = vsub.s32 %v34, 127
    %v36 = vand.u32 2147483647, %v27
    %v37 = vand.u32 %v36, 8388607
    %v38 = vor.u32 %v37, 8388608
    %v39 = vsub.s32 0, %v38
    %v40 = vadd.s32 %v35, 1
    %vm41 = vcmp.gt.s32.totalorder %v40, 0
    %v42 = vsel %vm41, %v40, 0
    %v43 = vshrl.u32 %v42, 5
    %v44 = vand.u32 %v42, 31
    %v45 = vsub.s32 32, %v44
    %v46 = vshrl.u32 683565275, %v45
    %v47 = vshll.u32 683565275, %v44
    %v48 = vshrl.u32 2475754826, %v45
    %v49 = vor.u32 %v47, %v48
    %v50 = vshll.u32 2475754826, %v44
    %v51 = vshrl.u32 2131351028, %v45
    %v52 = vor.u32 %v50, %v51
    %v53 = vshll.u32 2131351028, %v44
    %v54 = vshrl.u32 2102212464, %v45
    %v55 = vor.u32 %v53, %v54
    %v56 = vshll.u32 2102212464, %v44
    %v57 = vshrl.u32 920167782, %v45
    %v58 = vor.u32 %v56, %v57
    %v59 = vshll.u32 920167782, %v44
    %v60 = vshrl.u32 1326507024, %v45
    %v61 = vor.u32 %v59, %v60
    %vm62 = vcmp.lt.s32.totalorder %v43, 1
    %vm63 = vcmp.lt.s32.totalorder %v43, 2
    %vm64 = vcmp.lt.s32.totalorder %v43, 3
    %vm65 = vcmp.lt.s32.totalorder %v43, 4
    %v66 = vsel %vm62, %v46, %v49
    %v67 = vsel %vm65, %v55, 2102212464
    %v68 = vsel %vm64, %v52, %v67
    %v69 = vsel %vm63, %v66, %v68
    %v70 = vsel %vm62, %v49, %v52
    %v71 = vsel %vm65, %v58, 920167782
    %v72 = vsel %vm64, %v55, %v71
    %v73 = vsel %vm63, %v70, %v72
    %v74 = vsel %vm62, %v52, %v55
    %v75 = vsel %vm65, %v61, 1326507024
    %v76 = vsel %vm64, %v58, %v75
    %v77 = vsel %vm63, %v74, %v76
    %v78 = vshll.u32 %v38, 8
    %v79 = vand.u32 %v78, 65535
    %v80 = vshrl.u32 %v78, 16
    %v81 = vand.u32 %v77, 65535
    %v82 = vshrl.u32 %v77, 16
    %v83 = vmul.u32 %v79, %v81
    %v84 = vmul.u32 %v79, %v82
    %v85 = vmul.u32 %v80, %v81
    %v86 = vmul.u32 %v80, %v82
    %v87 = vshll.u32 %v84, 16
    %v88 = vshrl.u32 %v84, 16
    %v89 = vshll.u32 %v85, 16
    %v90 = vshrl.u32 %v85, 16
    %vm91 = vc.u32 %v83, %v87
    %v92 = vsel %vm91, 1, 0
    %v93 = vadd.s32 %v83, %v87
    %v94 = vadd.s32 %v86, %v92
    %vm95 = vc.u32 %v93, %v89
    %v96 = vsel %vm95, 1, 0
    %v97 = vadd.s32 %v93, %v89
    %v98 = vadd.s32 %v94, %v96
    %v99 = vadd.s32 %v98, %v88
    %v100 = vadd.s32 %v99, %v90
    %v101 = vand.u32 %v78, 65535
    %v102 = vshrl.u32 %v78, 16
    %v103 = vand.u32 %v73, 65535
    %v104 = vshrl.u32 %v73, 16
    %v105 = vmul.u32 %v101, %v103
    %v106 = vmul.u32 %v101, %v104
    %v107 = vmul.u32 %v102, %v103
    %v108 = vmul.u32 %v102, %v104
    %v109 = vshll.u32 %v106, 16
    %v110 = vshrl.u32 %v106, 16
    %v111 = vshll.u32 %v107, 16
    %v112 = vshrl.u32 %v107, 16
    %vm113 = vc.u32 %v105, %v109
    %v114 = vsel %vm113, 1, 0
    %v115 = vadd.s32 %v105, %v109
    %v116 = vadd.s32 %v108, %v114
    %vm117 = vc.u32 %v115, %v111
    %v118 = vsel %vm117, 1, 0
    %v119 = vadd.s32 %v115, %v111
    %v120 = vadd.s32 %v116, %v118
    %v121 = vadd.s32 %v120, %v110
    %v122 = vadd.s32 %v121, %v112
    %v123 = vmul.u32 %v78, %v69
    %v124 = vadd.s32 %v100, %v119
    %vm125 = vc.u32 %v100, %v119
    %v126 = vadd.s32 %v122, 1
    %v127 = vsel %vm125, %v126, %v122
    %v128 = vadd.s32 %v123, %v127
    %v129 = vadd.s32 %v128, 536870912
    %v130 = vshrl.u32 %v129, 30
    %v131 = vshll.u32 %v130, 30
    %v132 = vsub.s32 %v128, %v131
    %vm133 = vcmp.lt.s32.totalorder %v132, 0
    %v134 = vsub.s32 0, %v132
    %v135 = vsel %vm133, %v134, %v132
    %v136 = vclz %v135
    %v137 = vsub.s32 %v136, 2
    %vm138 = vcmp.gt.s32.totalorder 0, %v137
    %v139 = vsel %vm138, 0, %v137
    %v140 = vsub.s32 32, %v139
    %v141 = vshll.u32 %v132, %v139
    %v142 = vshrl.u32 %v124, %v140
    %v143 = vor.u32 %v141, %v142
    %v144 = vsub.s32 4294967266, %v139
    %v145 = vadd.s32 %v144, 127
    %v146 = vshll.u32 %v145, 23
    %v147 = vor.u32 4788187, %v146
    %v148 = vand.u32 2147483647, %v147
    %v150 = vcvt.s32.f32 %v143
    %v151 = vmul.f32 %v150, %v148
    %v152 = vxor.u32 %v151, 2147483648
    %v153 = vsel %vm32, %v152, %v151
    %v154 = vsub.s32 4, %v130
    %v155 = vsel %vm32, %v154, %v130
    %v156 = vsel %vm31, %v27, %v153
    %v157 = vsel %vm31, 0, %v155
    %v158 = vmul.f32 %v156, %v156
    %v159 = vmul.f32 %v158, -0.001358992
    %v160 = vadd.f32 %v159, 0.041655596
    %v161 = vmul.f32 %v158, %v160
    %v162 = vadd.f32 %v161, -0.4999988
    %v163 = vmul.f32 %v158, %v162
    %v164 = vadd.f32 1.0, %v163
    %v165 = vmul.f32 %v156, %v156
    %v166 = vmul.f32 %v165, -0.00019511016
    %v167 = vadd.f32 %v166, 0.008332121
    %v168 = vmul.f32 %v165, %v167
    %v169 = vadd.f32 %v168, -0.16666654
    %v170 = vmul.f32 %v165, %v169
    %v171 = vadd.f32 %v170, 1.0
    %v172 = vmul.f32 %v171, %v156
    %vm173 = vweird.f32 %v27
    %v174 = vand.u32 %v157, 3
    %vm175 = vcmp.lt.s32.totalorder %v174, 2
    %vm176 = vcmp.eq.s32.totalorder %v174, 0
    %v177 = vxor.u32 %v172, 2147483648
    %v178 = vsel %vm176, %v164, %v177
    %vm179 = vcmp.eq.s32.totalorder %v174, 2
    %v180 = vxor.u32 %v164, 2147483648
    %v181 = vsel %vm179, %v180, %v172
    %v182 = vsel %vm175, %v178, %v181
    %v183 = vsel %vm173, nan, %v182
    %v184 = vand.u32 2147483647, %v27
    %vm185 = vcmp.le.f32.partialorder %v184, 0.7853982
    %vm186 = vcmp.lt.s32.totalorder %v27, 0
    %v187 = vand.u32 %v27, 2139095040
    %v188 = vshrl.u32 %v187, 23
    %v189 = vsub.s32 %v188, 127
    %v190 = vand.u32 2147483647, %v27
    %v191 = vand.u32 %v190, 8388607
    %v192 = vor.u32 %v191, 8388608
    %v193 = vsub.s32 0, %v192
    %v194 = vadd.s32 %v189, 1
    %vm195 = vcmp.gt.s32.totalorder %v194, 0
    %v196 = vsel %vm195, %v194, 0
    %v197 = vshrl.u32 %v196, 5
    %v198 = vand.u32 %v196, 31
    %v199 = vsub.s32 32, %v198
    %v200 = vshrl.u32 683565275, %v199
    %v201 = vshll.u32 683565275, %v198
    %v202 = vshrl.u32 2475754826, %v199
    %v203 = vor.u32 %v201, %v202
    %v204 = vshll.u32 2475754826, %v198
    %v205 = vshrl.u32 2131351028, %v199
    %v206 = vor.u32 %v204, %v205
    %v207 = vshll.u32 2131351028, %v198
    %v208 = vshrl.u32 2102212464, %v199
    %v209 = vor.u32 %v207, %v208
    %v210 = vshll.u32 2102212464, %v198
    %v211 = vshrl.u32 920167782, %v199
    %v212 = vor.u32 %v210, %v211
    %v213 = vshll.u32 920167782, %v198
    %v214 = vshrl.u32 1326507024, %v199
    %v215 = vor.u32 %v213, %v214
    %vm216 = vcmp.lt.s32.totalorder %v197, 1
    %vm217 = vcmp.lt.s32.totalorder %v197, 2
    %vm218 = vcmp.lt.s32.totalorder %v197, 3
    %vm219 = vcmp.lt.s32.totalorder %v197, 4
    %v220 = vsel %vm216, %v200, %v203
    %v221 = vsel %vm219, %v209, 2102212464
    %v222 = vsel %vm218, %v206, %v221
    %v223 = vsel %vm217, %v220, %v222
    %v224 = vsel %vm216, %v203, %v206
    %v225 = vsel %vm219, %v212, 920167782
    %v226 = vsel %vm218, %v209, %v225
    %v227 = vsel %vm217, %v224, %v226
    %v228 = vsel %vm216, %v206, %v209
    %v229 = vsel %vm219, %v215, 1326507024
    %v230 = vsel %vm218, %v212, %v229
    %v231 = vsel %vm217, %v228, %v230
    %v232 = vshll.u32 %v192, 8
    %v233 = vand.u32 %v232, 65535
    %v234 = vshrl.u32 %v232, 16
    %v235 = vand.u32 %v231, 65535
    %v236 = vshrl.u32 %v231, 16
    %v237 = vmul.u32 %v233, %v235
    %v238 = vmul.u32 %v233, %v236
    %v239 = vmul.u32 %v234, %v235
    %v240 = vmul.u32 %v234, %v236
    %v241 = vshll.u32 %v238, 16
    %v242 = vshrl.u32 %v238, 16
    %v243 = vshll.u32 %v239, 16
    %v244 = vshrl.u32 %v239, 16
    %vm245 = vc.u32 %v237, %v241
    %v246 = vsel %vm245, 1, 0
    %v247 = vadd.s32 %v237, %v241
    %v248 = vadd.s32 %v240, %v246
    %vm249 = vc.u32 %v247, %v243
    %v250 = vsel %vm249, 1, 0
    %v251 = vadd.s32 %v247, %v243
    %v252 = vadd.s32 %v248, %v250
    %v253 = vadd.s32 %v252, %v242
    %v254 = vadd.s32 %v253, %v244
    %v255 = vand.u32 %v232, 65535
    %v256 = vshrl.u32 %v232, 16
    %v257 = vand.u32 %v227, 65535
    %v258 = vshrl.u32 %v227, 16
    %v259 = vmul.u32 %v255, %v257
    %v260 = vmul.u32 %v255, %v258
    %v261 = vmul.u32 %v256, %v257
    %v262 = vmul.u32 %v256, %v258
    %v263 = vshll.u32 %v260, 16
    %v264 = vshrl.u32 %v260, 16
    %v265 = vshll.u32 %v261, 16
    %v266 = vshrl.u32 %v261, 16
    %vm267 = vc.u32 %v259, %v263
    %v268 = vsel %vm267, 1, 0
    %v269 = vadd.s32 %v259, %v263
    %v270 = vadd.s32 %v262, %v268
    %vm271 = vc.u32 %v269, %v265
    %v272 = vsel %vm271, 1, 0
    %v273 = vadd.s32 %v269, %v265
    %v274 = vadd.s32 %v270, %v272
    %v275 = vadd.s32 %v274, %v264
    %v276 = vadd.s32 %v275, %v266
    %v277 = vmul.u32 %v232, %v223
    %v278 = vadd.s32 %v254, %v273
    %vm279 = vc.u32 %v254, %v273
    %v280 = vadd.s32 %v276, 1
    %v281 = vsel %vm279, %v280, %v276
    %v282 = vadd.s32 %v277, %v281
    %v283 = vadd.s32 %v282, 536870912
    %v284 = vshrl.u32 %v283, 30
    %v285 = vshll.u32 %v284, 30
    %v286 = vsub.s32 %v282, %v285
    %vm287 = vcmp.lt.s32.totalorder %v286, 0
    %v288 = vsub.s32 0, %v286
    %v289 = vsel %vm287, %v288, %v286
    %v290 = vclz %v289
    %v291 = vsub.s32 %v290, 2
    %vm292 = vcmp.gt.s32.totalorder 0, %v291
    %v293 = vsel %vm292, 0, %v291
    %v294 = vsub.s32 32, %v293
    %v295 = vshll.u32 %v286, %v293
    %v296 = vshrl.u32 %v278, %v294
    %v297 = vor.u32 %v295, %v296
    %v298 = vsub.s32 4294967266, %v293
    %v299 = vadd.s32 %v298, 127
    %v300 = vshll.u32 %v299, 23
    %v301 = vor.u32 4788187, %v300
    %v302 = vand.u32 2147483647, %v301
    %v304 = vcvt.s32.f32 %v297
    %v305 = vmul.f32 %v304, %v302
    %v306 = vxor.u32 %v305, 2147483648
    %v307 = vsel %vm186, %v306, %v305
    %v308 = vsub.s32 4, %v284
    %v309 = vsel %vm186, %v308, %v284
    %v310 = vsel %vm185, %v27, %v307
    %v311 = vsel %vm185, 0, %v309
    %v312 = vmul.f32 %v310, %v310
    %v313 = vmul.f32 %v312, -0.001358992
    %v314 = vadd.f32 %v313, 0.041655596
    %v315 = vmul.f32 %v312, %v314
    %v316 = vadd.f32 %v315, -0.4999988
    %v317 = vmul.f32 %v312, %v316
    %v318 = vadd.f32 1.0, %v317
    %v319 = vmul.f32 %v310, %v310
    %v320 = vmul.f32 %v319, -0.00019511016
    %v321 = vadd.f32 %v320, 0.008332121
    %v322 = vmul.f32 %v319, %v321
    %v323 = vadd.f32 %v322, -0.16666654
    %v324 = vmul.f32 %v319, %v323
    %v325 = vadd.f32 %v324, 1.0
    %v326 = vmul.f32 %v325, %v310
    %vm327 = vweird.f32 %v27
    %v328 = vadd.s32 %v311, 3
    %v329 = vand.u32 %v328, 3
    %vm330 = vcmp.lt.s32.totalorder %v329, 2
    %vm331 = vcmp.eq.s32.totalorder %v329, 0
    %v332 = vxor.u32 %v326, 2147483648
    %v333 = vsel %vm331, %v318, %v332
    %vm334 = vcmp.eq.s32.totalorder %v329, 2
    %v335 = vxor.u32 %v318, 2147483648
    %v336 = vsel %vm334, %v335, %v326
    %v337 = vsel %vm330, %v333, %v336
    %v338 = vsel %vm327, nan, %v337
    %v339 = vlaneseq
    %v340 = vand.u32 %v339, 127
    %vm341 = vcmp.eq.s32.totalorder %v340, 12
    %vm342 = vcmp.eq.s32.totalorder %v340, 16
    %vm343 = vcmp.eq.s32.totalorder %v340, 18
    %vm344 = vmor %vm341, %vm342
    %vm345 = vmor %vm344, %vm343
    %v346 = vsel %vm345, 1, 0
    %v347 = vcvt.s32.f32 %v346
    %vm348 = vcmp.eq.s32.totalorder %v340, 0
    %350 = vset.pattern.permute.xlu0 0
    %351 = vperm.xlu0 %350, %v26
    %v352 = vpop.permute.xlu0 %351
    %v354 = vsel %vm348, %v352, %v347
    %vm355 = vcmp.eq.s32.totalorder %v340, 1
    %vm356 = vcmp.eq.s32.totalorder %v340, 3
    %vm357 = vmor %vm355, %vm356
    %359 = vset.pattern.permute.xlu0 3
    %360 = vperm.xlu0 %359, %v28
    %v361 = vpop.permute.xlu0 %360
    %v363 = vsel %vm357, %v361, %v354
    %vm364 = vcmp.eq.s32.totalorder %v340, 4
    %365 = vset.pattern.permute.xlu0 1
    %366 = vperm.xlu0 %365, %v26
    %v367 = vpop.permute.xlu0 %366
    %v369 = vsel %vm364, %v367, %v363
    %vm370 = vcmp.eq.s32.totalorder %v340, 6
    %vm371 = vcmp.eq.s32.totalorder %v340, 10
    %vm372 = vmor %vm370, %vm371
    %374 = vset.pattern.permute.xlu0 2
    %375 = vperm.xlu0 %374, %v183
    %v376 = vpop.permute.xlu0 %375
    %v378 = vsel %vm372, %v376, %v369
    %vm379 = vcmp.eq.s32.totalorder %v340, 7
    %v380 = vsub.f32 0.0, %v338
    %382 = vset.pattern.permute.xlu0 2
    %383 = vperm.xlu0 %382, %v380
    %v384 = vpop.permute.xlu0 %383
    %v386 = vsel %vm379, %v384, %v378
    %vm387 = vcmp.eq.s32.totalorder %v340, 9
    %389 = vset.pattern.permute.xlu0 2
    %390 = vperm.xlu0 %389, %v338
    %v391 = vpop.permute.xlu0 %390
    %v393 = vsel %vm387, %v391, %v386
    %vm394 = vcmp.eq.s32.totalorder %v340, 14
    %396 = vset.pattern.permute.xlu0 4
    %397 = vperm.xlu0 %396, %v29
    %v398 = vpop.permute.xlu0 %397
    %v400 = vsel %vm394, %v398, %v393
    %vm401 = vcmp.eq.s32.totalorder %v340, 17
    %402 = vset.pattern.permute.xlu0 5
    %403 = vperm.xlu0 %402, %v29
    %v404 = vpop.permute.xlu0 %403
    %v406 = vsel %vm401, %v404, %v400
    %vm407 = vcmask 148480
    %408 = vst.msk [vmem:[#allocation5] sm:$0x3] %vm407, %v406
    // Predicated region
    $region10: #{tpu_custom_call.1} parent=1 // pred_check
      _
    $region11: #{tpu_custom_call.1} parent=1 // pred_check_branch
      %410 = sbr.rel (0) target = $region13
    $region12: #{tpu_custom_call.1} parent=1 // pred_region
      %412 = vsyncadd [#allocation4], 0
      %s414 = sshll.u32 [#allocation5], 4
      %s415 = int_to_ptr.vmem [resolvable:$true] %s414
      %s416 = sshll.u32 %s1, 4
      %s417 = int_to_ptr.hbm [resolvable:$true] %s416
      %419 = dma.vmem_to_hbm [thread:$0]  %s415, 32, %s417, [#allocation4]
    $region13: #{tpu_custom_call.1} parent=1 // pred_fallthru
      _
    // Predicated region
    $region14: #{tpu_custom_call.1} parent=1 // pred_check
      _
    $region15: #{tpu_custom_call.1} parent=1 // pred_check_branch
      %421 = sbr.rel (0) target = $region17
    $region16: #{tpu_custom_call.1} parent=1 // pred_region
      %423 = dma.done [#allocation4], 32
    $region17: #{tpu_custom_call.1} parent=1 // pred_fallthru
      _
    %424 = vsyncpa [#allocation3], 1
    %425 = vsyncpa [#allocation4], 1

</llo_original>
